<compile_context>
chip_gen: v5e
topology: v5e:2x2
jax: 0.10.0
libtpu: 0.0.40
codegen_flags: <defaults>
</compile_context>

<pallas_src>
import jax
import jax.numpy as jnp
import numpy as np
from jax.experimental import pallas as pl
from jax.experimental.pallas import tpu as pltpu


def _iwt_kernel(x_ref, out_ref):
    # x_ref  : (1, 4, tr, Wh)  sub-band rows [x1, x2, x3, x4] (unscaled)
    # out_ref: (1, tr, 4*Wh)   per source row: [interleave(y00,y01) | interleave(y10,y11)]
    wh = x_ref.shape[3]
    f32 = jnp.float32
    x1 = x_ref[0, 0].astype(f32)
    x2 = x_ref[0, 1].astype(f32)
    x3 = x_ref[0, 2].astype(f32)
    x4 = x_ref[0, 3].astype(f32)

    # Butterfly-factored synthesis combine (includes the /2 of the reference).
    a = x1 - x2
    b = x4 - x3
    c = x1 + x2
    d = x3 + x4
    y00 = (a + b) * 0.5   # even row, even col
    y10 = (a - b) * 0.5   # odd  row, even col
    y01 = (c - d) * 0.5   # even row, odd  col
    y11 = (c + d) * 0.5   # odd  row, odd  col

    # Column-parity interleave (width Wh -> 2*Wh) via exact 0/1 selection
    # matmuls on the otherwise-idle MXU. Precision.HIGHEST keeps the result
    # bit-exact (each output element is one input value times 1.0 plus zeros).
    lane = jax.lax.broadcasted_iota(jnp.int32, (wh, 2 * wh), 1)
    src = jax.lax.broadcasted_iota(jnp.int32, (wh, 2 * wh), 0)
    even_sel = (lane == 2 * src).astype(f32)       # src col w -> out col 2w
    odd_sel = (lane == 2 * src + 1).astype(f32)    # src col w -> out col 2w+1
    hp = jax.lax.Precision.HIGHEST
    row_even = (jnp.dot(y00, even_sel, precision=hp, preferred_element_type=f32)
                + jnp.dot(y01, odd_sel, precision=hp, preferred_element_type=f32))
    row_odd = (jnp.dot(y10, even_sel, precision=hp, preferred_element_type=f32)
               + jnp.dot(y11, odd_sel, precision=hp, preferred_element_type=f32))

    # Row-parity interleave is free layout: for each source row, the output
    # image rows (2h, 2h+1) live contiguously as [row_even | row_odd] in the
    # 4*Wh lane dim of this block (see the wrapper's final reshape).
    w2 = 2 * wh
    out_ref[0, :, 0:w2] = row_even.astype(out_ref.dtype)
    out_ref[0, :, w2:2 * w2] = row_odd.astype(out_ref.dtype)


def _pick_row_tile(rows, wh, itemsize, budget_bytes):
    """Largest legal row tile (multiple of 8 dividing `rows`, or full extent)
    whose double-buffered I/O + f32 temporaries fit the VMEM budget."""
    per_row = wh * (16 * itemsize + 64)   # dbl-buffered in+out blocks + f32 temps
    cap = max(1, budget_bytes // per_row)
    if rows <= cap:
        return rows                        # full extent is always a legal block dim
    best = 0
    d = 8
    while d <= cap:
        if rows % d == 0:
            best = d
        d += 8
    # Fallback for pathological shapes with no fitting multiple-of-8 divisor.
    return best if best else rows


def iwt(x, *, vmem_budget_bytes=8 * 1024 * 1024):
    """Pallas IWT. x: (N, 4C, Hh, Wh) -> (N, C, 2*Hh, 2*Wh)."""
    N, C4, Hh, Wh = x.shape
    assert C4 % 4 == 0, "IWT needs channels divisible by 4"
    C = C4 // 4
    rows = C * Hh

    # Free contiguous reshape: channel dim (4C) -> (4, C), then merge (C, Hh).
    xr = x.reshape(N, 4, rows, Wh)

    itemsize = jnp.dtype(x.dtype).itemsize
    tr = _pick_row_tile(rows, Wh, itemsize, vmem_budget_bytes)
    num_row_tiles = rows // tr

    in_spec = pl.BlockSpec((1, 4, tr, Wh), lambda n, r: (n, 0, r, 0))
    out_spec = pl.BlockSpec((1, tr, 4 * Wh), lambda n, r: (n, r, 0))

    out = pl.pallas_call(
        _iwt_kernel,
        out_shape=jax.ShapeDtypeStruct((N, rows, 4 * Wh), x.dtype),
        grid=(N, num_row_tiles),
        in_specs=[in_spec],
        out_specs=out_spec,
        compiler_params=pltpu.CompilerParams(
            dimension_semantics=("parallel", "parallel"),
            vmem_limit_bytes=32 * 1024 * 1024),
    )(xr)

    # Free contiguous reshape back to NCHW: (N, C*Hh, 2*2*Wh) == (N, C, 2Hh, 2Wh).
    return out.reshape(N, C, 2 * Hh, 2 * Wh)


def iwt_reference(x):
    """Pure-JAX transcription of the PyTorch IWT forward, for verification."""
    N, C4, Hh, Wh = x.shape
    C = C4 // 4
    x1 = x[:, 0:C] / 2
    x2 = x[:, C:2 * C] / 2
    x3 = x[:, 2 * C:3 * C] / 2
    x4 = x[:, 3 * C:4 * C] / 2
    h = jnp.zeros((N, C, 2 * Hh, 2 * Wh), x.dtype)
    h = h.at[:, :, 0::2, 0::2].set(x1 - x2 - x3 + x4)
    h = h.at[:, :, 1::2, 0::2].set(x1 - x2 + x3 - x4)
    h = h.at[:, :, 0::2, 1::2].set(x1 + x2 - x3 - x4)
    h = h.at[:, :, 1::2, 1::2].set(x1 + x2 + x3 + x4)
    return h


if __name__ == "__main__":
    # IWT has no learnable parameters (requires_grad = False in __init__).
    key = jax.random.PRNGKey(0)
    # (N, 4*C, Hh, Wh) = (2, 16, 8, 8) -> output (2, 4, 16, 16).
    x = jax.random.normal(key, (2, 16, 8, 8), dtype=jnp.float32)

    out = jax.block_until_ready(iwt(x))
    ref = iwt_reference(x)
    assert out.shape == (2, 4, 16, 16), out.shape
    assert out.dtype == x.dtype
    assert np.allclose(np.asarray(out), np.asarray(ref), atol=1e-5, rtol=1e-5)

    # Also exercise the row-tiled multi-step grid path (tiny VMEM budget).
    out_tiled = jax.block_until_ready(iwt(x, vmem_budget_bytes=16 * 1024))
    assert np.allclose(np.asarray(out_tiled), np.asarray(ref), atol=1e-5, rtol=1e-5)

    print("KERNEL_OK")
</pallas_src>

<mosaic_0001>
module attributes {stable_mosaic.version = 11 : i64} {
  func.func @_iwt_kernel(%arg0: i32, %arg1: i32, %arg2: memref<1x4x32x8xf32, #tpu.memory_space<vmem>>, %arg3: memref<1x32x32xf32, #tpu.memory_space<vmem>>) attributes {dimension_semantics = [#tpu.dimension_semantics<parallel>, #tpu.dimension_semantics<parallel>], iteration_bounds = array<i64: 2, 1>, scalar_prefetch = 0 : i64, scratch_operands = 0 : i64, tpu.core_type = #tpu.core_type<tc>, window_params = [{transform_indices = @transform_0, window_bounds = array<i64: 1, 4, 32, 8>}, {transform_indices = @transform_1, window_bounds = array<i64: 1, 32, 32>}]} {
    %c0 = arith.constant 0 : index
    %c0_0 = arith.constant 0 : index
    %c0_1 = arith.constant 0 : index
    %c0_2 = arith.constant 0 : index
    %0 = vector.load %arg2[%c0, %c0_0, %c0_1, %c0_2] : memref<1x4x32x8xf32, #tpu.memory_space<vmem>>, vector<1x1x32x8xf32>
    %1 = vector.shape_cast %0 : vector<1x1x32x8xf32> to vector<32x8xf32>
    %c0_3 = arith.constant 0 : index
    %c1 = arith.constant 1 : index
    %c0_4 = arith.constant 0 : index
    %c0_5 = arith.constant 0 : index
    %2 = vector.load %arg2[%c0_3, %c1, %c0_4, %c0_5] : memref<1x4x32x8xf32, #tpu.memory_space<vmem>>, vector<1x1x32x8xf32>
    %3 = vector.shape_cast %2 : vector<1x1x32x8xf32> to vector<32x8xf32>
    %c0_6 = arith.constant 0 : index
    %c2 = arith.constant 2 : index
    %c0_7 = arith.constant 0 : index
    %c0_8 = arith.constant 0 : index
    %4 = vector.load %arg2[%c0_6, %c2, %c0_7, %c0_8] : memref<1x4x32x8xf32, #tpu.memory_space<vmem>>, vector<1x1x32x8xf32>
    %5 = vector.shape_cast %4 : vector<1x1x32x8xf32> to vector<32x8xf32>
    %c0_9 = arith.constant 0 : index
    %c3 = arith.constant 3 : index
    %c0_10 = arith.constant 0 : index
    %c0_11 = arith.constant 0 : index
    %6 = vector.load %arg2[%c0_9, %c3, %c0_10, %c0_11] : memref<1x4x32x8xf32, #tpu.memory_space<vmem>>, vector<1x1x32x8xf32>
    %7 = vector.shape_cast %6 : vector<1x1x32x8xf32> to vector<32x8xf32>
    %8 = arith.subf %1, %3 : vector<32x8xf32>
    %9 = arith.subf %7, %5 : vector<32x8xf32>
    %10 = arith.addf %1, %3 : vector<32x8xf32>
    %11 = arith.addf %5, %7 : vector<32x8xf32>
    %12 = arith.addf %8, %9 : vector<32x8xf32>
    %cst = arith.constant 5.000000e-01 : f32
    %13 = vector.broadcast %cst : f32 to vector<32x8xf32>
    %14 = arith.mulf %12, %13 : vector<32x8xf32>
    %15 = arith.subf %8, %9 : vector<32x8xf32>
    %cst_12 = arith.constant 5.000000e-01 : f32
    %16 = vector.broadcast %cst_12 : f32 to vector<32x8xf32>
    %17 = arith.mulf %15, %16 : vector<32x8xf32>
    %18 = arith.subf %10, %11 : vector<32x8xf32>
    %cst_13 = arith.constant 5.000000e-01 : f32
    %19 = vector.broadcast %cst_13 : f32 to vector<32x8xf32>
    %20 = arith.mulf %18, %19 : vector<32x8xf32>
    %21 = arith.addf %10, %11 : vector<32x8xf32>
    %cst_14 = arith.constant 5.000000e-01 : f32
    %22 = vector.broadcast %cst_14 : f32 to vector<32x8xf32>
    %23 = arith.mulf %21, %22 : vector<32x8xf32>
    %24 = tpu.iota {dimensions = array<i32: 1>} : vector<8x16xi32>
    %25 = tpu.iota {dimensions = array<i32: 0>} : vector<8x16xi32>
    %c2_i32 = arith.constant 2 : i32
    %26 = vector.broadcast %c2_i32 : i32 to vector<8x16xi32>
    %27 = arith.muli %26, %25 : vector<8x16xi32>
    %28 = arith.cmpi eq, %24, %27 : vector<8x16xi32>
    %29 = arith.extui %28 : vector<8x16xi1> to vector<8x16xi32>
    %30 = arith.sitofp %29 : vector<8x16xi32> to vector<8x16xf32>
    %c2_i32_15 = arith.constant 2 : i32
    %31 = vector.broadcast %c2_i32_15 : i32 to vector<8x16xi32>
    %32 = arith.muli %31, %25 : vector<8x16xi32>
    %c1_i32 = arith.constant 1 : i32
    %33 = vector.broadcast %c1_i32 : i32 to vector<8x16xi32>
    %34 = arith.addi %32, %33 : vector<8x16xi32>
    %35 = arith.cmpi eq, %24, %34 : vector<8x16xi32>
    %36 = arith.extui %35 : vector<8x16xi1> to vector<8x16xi32>
    %37 = arith.sitofp %36 : vector<8x16xi32> to vector<8x16xf32>
    %cst_16 = arith.constant dense<0.000000e+00> : vector<32x16xf32>
    %38 = tpu.matmul %14, %30, %cst_16 {dimension_numbers = #tpu.dot_dimension_numbers<[1], [0], [0], [1], [0, 0, 1, 1], [], []>, precision = #tpu.contract_precision<fp32>} : vector<32x8xf32>, vector<8x16xf32>, vector<32x16xf32> -> vector<32x16xf32>
    %cst_17 = arith.constant dense<0.000000e+00> : vector<32x16xf32>
    %39 = tpu.matmul %20, %37, %cst_17 {dimension_numbers = #tpu.dot_dimension_numbers<[1], [0], [0], [1], [0, 0, 1, 1], [], []>, precision = #tpu.contract_precision<fp32>} : vector<32x8xf32>, vector<8x16xf32>, vector<32x16xf32> -> vector<32x16xf32>
    %40 = arith.addf %38, %39 : vector<32x16xf32>
    %cst_18 = arith.constant dense<0.000000e+00> : vector<32x16xf32>
    %41 = tpu.matmul %17, %30, %cst_18 {dimension_numbers = #tpu.dot_dimension_numbers<[1], [0], [0], [1], [0, 0, 1, 1], [], []>, precision = #tpu.contract_precision<fp32>} : vector<32x8xf32>, vector<8x16xf32>, vector<32x16xf32> -> vector<32x16xf32>
    %cst_19 = arith.constant dense<0.000000e+00> : vector<32x16xf32>
    %42 = tpu.matmul %23, %37, %cst_19 {dimension_numbers = #tpu.dot_dimension_numbers<[1], [0], [0], [1], [0, 0, 1, 1], [], []>, precision = #tpu.contract_precision<fp32>} : vector<32x8xf32>, vector<8x16xf32>, vector<32x16xf32> -> vector<32x16xf32>
    %43 = arith.addf %41, %42 : vector<32x16xf32>
    %c0_20 = arith.constant 0 : index
    %c0_21 = arith.constant 0 : index
    %c0_22 = arith.constant 0 : index
    %44 = vector.load %arg3[%c0_20, %c0_21, %c0_22] : memref<1x32x32xf32, #tpu.memory_space<vmem>>, vector<1x32x16xf32>
    %45 = vector.shape_cast %44 : vector<1x32x16xf32> to vector<32x16xf32>
    %46 = vector.shape_cast %40 : vector<32x16xf32> to vector<1x32x16xf32>
    tpu.vector_store %arg3[%c0_20, %c0_21, %c0_22], %46 {strides = array<i32>} : memref<1x32x32xf32, #tpu.memory_space<vmem>>, vector<1x32x16xf32>,
    %c0_23 = arith.constant 0 : index
    %c0_24 = arith.constant 0 : index
    %c16 = arith.constant 16 : index
    %47 = vector.load %arg3[%c0_23, %c0_24, %c16] : memref<1x32x32xf32, #tpu.memory_space<vmem>>, vector<1x32x16xf32>
    %48 = vector.shape_cast %47 : vector<1x32x16xf32> to vector<32x16xf32>
    %49 = vector.shape_cast %43 : vector<32x16xf32> to vector<1x32x16xf32>
    tpu.vector_store %arg3[%c0_23, %c0_24, %c16], %49 {strides = array<i32>} : memref<1x32x32xf32, #tpu.memory_space<vmem>>, vector<1x32x16xf32>,
    return
  }
  func.func @transform_0(%arg0: i32, %arg1: i32) -> (i32, i32, i32, i32) {
    %c0_i32 = arith.constant 0 : i32
    %c0_i32_0 = arith.constant 0 : i32
    %c0_i32_1 = arith.constant 0 : i32
    return %arg0, %c0_i32, %arg1, %c0_i32_0 : i32, i32, i32, i32
  }
  func.func @transform_1(%arg0: i32, %arg1: i32) -> (i32, i32, i32) {
    %c0_i32 = arith.constant 0 : i32
    %c0_i32_0 = arith.constant 0 : i32
    return %arg0, %arg1, %c0_i32 : i32, i32, i32
  }
}

</mosaic_0001>

<llo_original>
// kernel: tpu_custom_call.1
$region0: #{tpu_custom_call.1}
  #allocation0 [shape = 'u32[]', space=smem, size = 0x4, offset = 0x4, fixed_abs, tag = 'smem constant byte address 0x4 - core index']
  #allocation1 [shape = 'u32[72,128]{1,0:T(1,128)}', space=vmem, size = 0x9000, scoped, tag = 'internal scratch']
  %s0 = inlined_call_operand.vmem [shape: f32[2,4,32,8], index: 0, kind: input, shape index: {}]
  %s1 = inlined_call_operand.hbm [shape: f32[2,32,32], index: 1, kind: output, shape index: {}]
  %s2 = sld [smem:[#allocation0]]
  $region37: #{tpu_custom_call.1} parent=0
    _
  %s4 = ssub.s32 1, %s2
  %s5 = scalar_select 0, %s4, %s2
  $region1: #{tpu_custom_call.1} parent=0
    #allocation2 [shape = 'u8[32768]{0}', space=vmem, size = 0x8000, scoped, tag = 'output window, operand 0']
    #allocation3 [shape = 's32[2]{0}', space=sflag, size = 0x8, scoped, tag = 'scoped memory for tpu_custom_call.1']
    %6 = vsyncpa [#allocation3], 0
    %s7 = scalar_lea.sflag [#allocation3], 1
    %8 = vsyncpa %s7, 0
    loop: start=0, step=1, limit=4
    $region2: #{tpu_custom_call.1} parent=1 // loop_pre_header
      _
    $region3: #{tpu_custom_call.1} parent=1 // loop_header
      %s10 = sphi 0, %s14
      %p11 = scmp.ge.s32.totalorder %s10, 4
      %s17 = sphi 0, %s29
      %s18 = sphi 0, %s25
      %s19 = sphi 0, %s17
      %s20 = sphi 0, %s18
      %s21 = sphi 0, %s19
      %s22 = sphi 0, %s20
      %s34 = sphi 0, %s36
      %s37 = sphi 0, %s34
      %s38 = sphi 0, %s37
      %s54 = sphi 0, %s38
      %s62 = sphi 0, %s64
      %s65 = sphi 0, %s62
      %s66 = sphi 0, %s65
      %s82 = sphi 0, %s66
    $region4: #{tpu_custom_call.1} parent=1 // loop_header_branch
      %13 = sbr.rel (%p11) target = $region8
    $region5: #{tpu_custom_call.1} parent=1 // loop_body
      %s15 = ssub.s32 %s10, 1
      %s16 = ssub.s32 %s10, 2
      %s23 = sadd.s32 1, %s18
      %p24 = scmp.ge.s32.totalorder %s23, 1
      %s25 = scalar_select %p24, 0, %s23
      %s26 = sadd.s32 1, %s17
      %s27 = scalar_select %p24, %s26, %s17
      %p28 = scmp.ge.s32.totalorder %s27, 2
      %s29 = scalar_select %p28, 0, %s27
      %s30 = ssub.s32 %s17, %s29
      %s31 = ssub.s32 %s18, %s25
      %s32 = sor.u32 %s30, %s31
      %p33 = scmp.eq.s32.totalorder %s32, 0
      %s35 = sadd.s32 %s34, 1
      %s36 = scalar_select %p33, %s34, %s35
      %p39 = pneg %p33
      %p40 = scmp.eq.s32.totalorder %s10, 1
      %p41 = por %p39, %p40
      %p42 = scmp.ne.s32.totalorder %s34, %s37
      %p43 = scmp.eq.s32.totalorder %s10, 0
      %p44 = por %p42, %p43
      %p45 = scmp.ne.s32.totalorder %s34, %s37
      %p46 = scmp.eq.s32.totalorder %s15, 1
      %p47 = por %p45, %p46
      %p48 = scmp.ne.s32.totalorder %s37, %s38
      %p49 = scmp.eq.s32.totalorder %s15, 0
      %p50 = por %p48, %p49
      %p51 = scmp.ne.s32.totalorder %s37, %s38
      %p52 = scmp.eq.s32.totalorder %s16, 1
      %p53 = por %p51, %p52
      %p55 = scmp.ne.s32.totalorder %s38, %s54
      %p56 = scmp.eq.s32.totalorder %s16, 0
      %p57 = por %p55, %p56
      %s58 = ssub.s32 %s17, %s29
      %s59 = ssub.s32 %s18, %s25
      %s60 = sor.u32 %s58, %s59
      %p61 = scmp.eq.s32.totalorder %s60, 0
      %s63 = sadd.s32 %s62, 1
      %s64 = scalar_select %p61, %s62, %s63
      %p67 = pneg %p61
      %p68 = scmp.eq.s32.totalorder %s10, 1
      %p69 = por %p67, %p68
      %p70 = scmp.ne.s32.totalorder %s62, %s65
      %p71 = scmp.eq.s32.totalorder %s10, 0
      %p72 = por %p70, %p71
      %p73 = scmp.ne.s32.totalorder %s62, %s65
      %p74 = scmp.eq.s32.totalorder %s15, 1
      %p75 = por %p73, %p74
      %p76 = scmp.ne.s32.totalorder %s65, %s66
      %p77 = scmp.eq.s32.totalorder %s15, 0
      %p78 = por %p76, %p77
      %p79 = scmp.ne.s32.totalorder %s65, %s66
      %p80 = scmp.eq.s32.totalorder %s16, 1
      %p81 = por %p79, %p80
      %p83 = scmp.ne.s32.totalorder %s66, %s82
      %p84 = scmp.eq.s32.totalorder %s16, 0
      %p85 = por %p83, %p84
      %p86 = scmp.le.s32.totalorder 1, %s10
      %p87 = scmp.lt.s32.totalorder %s10, 3
      %p88 = pnand %p86, %p87
      %p89 = pneg %p88
      // Predicated region
      $region9: #{tpu_custom_call.1} parent=5 // pred_check
        _
      $region10: #{tpu_custom_call.1} parent=5 // pred_check_branch
        %91 = sbr.rel (%p88) target = $region12
      $region11: #{tpu_custom_call.1} parent=5 // pred_region
        %s92 = ssub.s32 %s10, 1
      $region12: #{tpu_custom_call.1} parent=5 // pred_fallthru
        _
      %p93 = scmp.lt.s32.totalorder %s10, 2
      // Predicated region
      $region13: #{tpu_custom_call.1} parent=5 // pred_check
        %p94 = pneg %p93
      $region14: #{tpu_custom_call.1} parent=5 // pred_check_branch
        %96 = sbr.rel (%p94) target = $region16
      $region15: #{tpu_custom_call.1} parent=5 // pred_region
        // Predicated region
        $region17: #{tpu_custom_call.1} parent=15 // pred_check
          %p97 = pneg %p44
        $region18: #{tpu_custom_call.1} parent=15 // pred_check_branch
          %99 = sbr.rel (%p97) target = $region20
        $region19: #{tpu_custom_call.1} parent=15 // pred_region
          %s100 = smul.u32 4, %s18
          %p101 = scmp.lt.s32.totalorder %s17, 1
          %s102 = scalar_select %p101, %s17, 1
          %p103 = scmp.lt.s32.totalorder %s100, 3
          %s104 = scalar_select %p103, %s100, 3
          %s105 = smul.addr %s102, 16
          %s106 = sadd.s32 %s104, %s105
          %s107 = smul.addr %s106, 8
          %s108 = scalar_lea.vmem %s0, %s107
          %s109 = smul.u32 4, %s18
        $region20: #{tpu_custom_call.1} parent=15 // pred_fallthru
          _
      $region16: #{tpu_custom_call.1} parent=5 // pred_fallthru
        _
      %p110 = scmp.le.s32.totalorder 1, %s10
      %p111 = scmp.lt.s32.totalorder %s10, 3
      %p112 = pnand %p110, %p111
      %p113 = pneg %p112
      // Predicated region
      $region21: #{tpu_custom_call.1} parent=5 // pred_check
        _
      $region22: #{tpu_custom_call.1} parent=5 // pred_check_branch
        %115 = sbr.rel (%p112) target = $region24
      $region23: #{tpu_custom_call.1} parent=5 // pred_region
        %s116 = ssub.s32 %s10, 1
        %s117 = smul.u32 4, %s20
        %p118 = scmp.lt.s32.totalorder %s19, 1
        %s119 = scalar_select %p118, %s19, 1
        %p120 = scmp.lt.s32.totalorder %s117, 3
        %s121 = scalar_select %p120, %s117, 3
        %s122 = smul.addr %s119, 16
        %s123 = sadd.s32 %s121, %s122
        %s124 = smul.addr %s123, 8
        %s125 = scalar_lea.vmem %s0, %s124
        %p126 = pneg %p50
        %p127 = pneg %p47
        %p128 = pneg %p78
        %p129 = pneg %p75
        %s130 = sand.u32 %s65, 1
        %s131 = scalar_lea.sflag [#allocation3], %s130
        %s132 = sand.u32 %s65, 1
        %s133 = smul.addr %s132, 32
        %s134 = scalar_lea.vmem [#allocation2], %s133
        %s135 = smul.u32 4, %s20
        %p136 = scmp.lt.s32.totalorder %s19, 1
        %s137 = scalar_select %p136, %s19, 1
        %p138 = scmp.lt.s32.totalorder %s135, 3
        %s139 = scalar_select %p138, %s135, 3
        %s140 = smul.addr %s137, 16
        %s141 = sadd.s32 %s139, %s140
        %s142 = smul.addr %s141, 8
        %s143 = scalar_lea.vmem %s0, %s142
        %s144 = smul.u32 4, %s20
        %s145 = smul.u32 4, %s20
        %v146 = vld [vmem:[%s143] sm:$0xff]
        %v147 = vld [vmem:[%s143 + $0x8] sm:$0xff]
        %v148 = vld [vmem:[%s143 + $0x10] sm:$0xff]
        %v149 = vld [vmem:[%s143 + $0x18] sm:$0xff]
        %s150 = scalar_lea.vmem %s143, 32
        %v151 = vld [vmem:[%s150] sm:$0xff]
        %v152 = vld [vmem:[%s150 + $0x8] sm:$0xff]
        %v153 = vld [vmem:[%s150 + $0x10] sm:$0xff]
        %v154 = vld [vmem:[%s150 + $0x18] sm:$0xff]
        %s155 = scalar_lea.vmem %s143, 64
        %v156 = vld [vmem:[%s155] sm:$0xff]
        %v157 = vld [vmem:[%s155 + $0x8] sm:$0xff]
        %v158 = vld [vmem:[%s155 + $0x10] sm:$0xff]
        %v159 = vld [vmem:[%s155 + $0x18] sm:$0xff]
        %s160 = scalar_lea.vmem %s143, 96
        %v161 = vld [vmem:[%s160] sm:$0xff]
        %v162 = vld [vmem:[%s160 + $0x8] sm:$0xff]
        %v163 = vld [vmem:[%s160 + $0x10] sm:$0xff]
        %v164 = vld [vmem:[%s160 + $0x18] sm:$0xff]
        %v165 = vsub.f32 %v146, %v151
        %v166 = vsub.f32 %v147, %v152
        %v167 = vsub.f32 %v148, %v153
        %v168 = vsub.f32 %v149, %v154
        %v169 = vsub.f32 %v161, %v156
        %v170 = vsub.f32 %v162, %v157
        %v171 = vsub.f32 %v163, %v158
        %v172 = vsub.f32 %v164, %v159
        %v173 = vadd.f32 %v146, %v151
        %v174 = vadd.f32 %v147, %v152
        %v175 = vadd.f32 %v148, %v153
        %v176 = vadd.f32 %v149, %v154
        %v177 = vadd.f32 %v156, %v161
        %v178 = vadd.f32 %v157, %v162
        %v179 = vadd.f32 %v158, %v163
        %v180 = vadd.f32 %v159, %v164
        %v181 = vadd.f32 %v165, %v169
        %v182 = vadd.f32 %v166, %v170
        %v183 = vadd.f32 %v167, %v171
        %v184 = vadd.f32 %v168, %v172
        %v185 = vmul.f32 %v181, 0.5
        %v186 = vmul.f32 %v182, 0.5
        %v187 = vmul.f32 %v183, 0.5
        %v188 = vmul.f32 %v184, 0.5
        %v189 = vsub.f32 %v165, %v169
        %v190 = vsub.f32 %v166, %v170
        %v191 = vsub.f32 %v167, %v171
        %v192 = vsub.f32 %v168, %v172
        %v193 = vmul.f32 %v189, 0.5
        %v194 = vmul.f32 %v190, 0.5
        %v195 = vmul.f32 %v191, 0.5
        %v196 = vmul.f32 %v192, 0.5
        %v197 = vsub.f32 %v173, %v177
        %v198 = vsub.f32 %v174, %v178
        %v199 = vsub.f32 %v175, %v179
        %v200 = vsub.f32 %v176, %v180
        %v201 = vmul.f32 %v197, 0.5
        %v202 = vmul.f32 %v198, 0.5
        %v203 = vmul.f32 %v199, 0.5
        %v204 = vmul.f32 %v200, 0.5
        %v205 = vadd.f32 %v173, %v177
        %v206 = vadd.f32 %v174, %v178
        %v207 = vadd.f32 %v175, %v179
        %v208 = vadd.f32 %v176, %v180
        %v209 = vmul.f32 %v205, 0.5
        %v210 = vmul.f32 %v206, 0.5
        %v211 = vmul.f32 %v207, 0.5
        %v212 = vmul.f32 %v208, 0.5
        %v213 = vlaneseq
        %v214 = vand.u32 %v213, 127
        %v215 = vlaneseq
        %v216 = vshrl.u32 %v215, 7
        %v217 = vmul.u32 %v216, 2
        %vm218 = vcmp.eq.s32.totalorder %v214, %v217
        %v219 = vsel %vm218, 1, 0
        %v220 = vcvt.s32.f32 %v219
        %v221 = vadd.s32 %v217, 1
        %vm222 = vcmp.eq.s32.totalorder %v214, %v221
        %v223 = vsel %vm222, 1, 0
        %v224 = vcvt.s32.f32 %v223
        %vm225 = vcmask 64512
        %v227 = vsel %vm225, %v201, 0
        %v230 = vsel %vm225, %v202, 0
        %v233 = vsel %vm225, %v203, 0
        %v236 = vsel %vm225, %v204, 0
        %238 = vmatpush.msra.mxu0 0.0
        %239 = vmatpush.msra.mxu0 0.0
        %240 = vmatpush.msra.mxu0 0.0
        %241 = vmatpush.msra.mxu0 0.0
        %242 = vmatpush.msra.mxu0 0.0
        %243 = vmatpush.msra.mxu0 0.0
        %244 = vmatpush.msra.mxu0 0.0
        %245 = vmatpush.msra.mxu0 0.0
        %246 = vmatpush.msra.mxu0 0.0
        %247 = vmatpush.msra.mxu0 0.0
        %248 = vmatpush.msra.mxu0 0.0
        %249 = vmatpush.msra.mxu0 0.0
        %250 = vmatpush.msra.mxu0 0.0
        %251 = vmatpush.msra.mxu0 0.0
        %252 = vmatpush.msra.mxu0 0.0
        %v253 = vand.u32 %v224, 4294901760
        %254 = vmatpush.msra.mxu0 %v253
        %v255 = vand.u32 %v227, 4294901760
        %v256 = vsub.f32 %v227, %v255
        %v257 = vand.u32 %v256, 4294901760
        %v258 = vsub.f32 %v256, %v257
        %v259 = vand.u32 %v258, 4294901760
        %260 = vmatmul.f32.gmra.mxu0 %v259
        %v261 = vpop.f32.mrf.mxu0
        %v262 = vadd.f32 0.0, %v261
        %v263 = vand.u32 %v230, 4294901760
        %v264 = vsub.f32 %v230, %v263
        %v265 = vand.u32 %v264, 4294901760
        %v266 = vsub.f32 %v264, %v265
        %v267 = vand.u32 %v266, 4294901760
        %268 = vmatmul.f32.gmra.mxu0 %v267
        %v269 = vpop.f32.mrf.mxu0
        %v270 = vadd.f32 0.0, %v269
        %v271 = vand.u32 %v233, 4294901760
        %v272 = vsub.f32 %v233, %v271
        %v273 = vand.u32 %v272, 4294901760
        %v274 = vsub.f32 %v272, %v273
        %v275 = vand.u32 %v274, 4294901760
        %276 = vmatmul.f32.gmra.mxu0 %v275
        %v277 = vpop.f32.mrf.mxu0
        %v278 = vadd.f32 0.0, %v277
        %v279 = vand.u32 %v236, 4294901760
        %v280 = vsub.f32 %v236, %v279
        %v281 = vand.u32 %v280, 4294901760
        %v282 = vsub.f32 %v280, %v281
        %v283 = vand.u32 %v282, 4294901760
        %284 = vmatmul.f32.gmra.mxu0 %v283
        %v285 = vpop.f32.mrf.mxu0
        %v286 = vadd.f32 0.0, %v285
        %287 = vdwg.mxu0
        %288 = vmatpush.msra.mxu0 0.0
        %289 = vmatpush.msra.mxu0 0.0
        %290 = vmatpush.msra.mxu0 0.0
        %291 = vmatpush.msra.mxu0 0.0
        %292 = vmatpush.msra.mxu0 0.0
        %293 = vmatpush.msra.mxu0 0.0
        %294 = vmatpush.msra.mxu0 0.0
        %295 = vmatpush.msra.mxu0 0.0
        %296 = vmatpush.msra.mxu0 0.0
        %297 = vmatpush.msra.mxu0 0.0
        %298 = vmatpush.msra.mxu0 0.0
        %299 = vmatpush.msra.mxu0 0.0
        %300 = vmatpush.msra.mxu0 0.0
        %301 = vmatpush.msra.mxu0 0.0
        %302 = vmatpush.msra.mxu0 0.0
        %v303 = vand.u32 %v224, 4294901760
        %v304 = vsub.f32 %v224, %v303
        %v305 = vand.u32 %v304, 4294901760
        %v306 = vsub.f32 %v304, %v305
        %v307 = vand.u32 %v306, 4294901760
        %308 = vmatpush.msra.mxu0 %v307
        %v309 = vand.u32 %v227, 4294901760
        %310 = vmatmul.f32.gmra.mxu0 %v309
        %v311 = vpop.f32.mrf.mxu0
        %v312 = vadd.f32 %v262, %v311
        %v313 = vand.u32 %v230, 4294901760
        %314 = vmatmul.f32.gmra.mxu0 %v313
        %v315 = vpop.f32.mrf.mxu0
        %v316 = vadd.f32 %v270, %v315
        %v317 = vand.u32 %v233, 4294901760
        %318 = vmatmul.f32.gmra.mxu0 %v317
        %v319 = vpop.f32.mrf.mxu0
        %v320 = vadd.f32 %v278, %v319
        %v321 = vand.u32 %v236, 4294901760
        %322 = vmatmul.f32.gmra.mxu0 %v321
        %v323 = vpop.f32.mrf.mxu0
        %v324 = vadd.f32 %v286, %v323
        %325 = vdwg.mxu0
        %326 = vmatpush.msra.mxu0 0.0
        %327 = vmatpush.msra.mxu0 0.0
        %328 = vmatpush.msra.mxu0 0.0
        %329 = vmatpush.msra.mxu0 0.0
        %330 = vmatpush.msra.mxu0 0.0
        %331 = vmatpush.msra.mxu0 0.0
        %332 = vmatpush.msra.mxu0 0.0
        %333 = vmatpush.msra.mxu0 0.0
        %334 = vmatpush.msra.mxu0 0.0
        %335 = vmatpush.msra.mxu0 0.0
        %336 = vmatpush.msra.mxu0 0.0
        %337 = vmatpush.msra.mxu0 0.0
        %338 = vmatpush.msra.mxu0 0.0
        %339 = vmatpush.msra.mxu0 0.0
        %340 = vmatpush.msra.mxu0 0.0
        %v341 = vand.u32 %v224, 4294901760
        %v342 = vsub.f32 %v224, %v341
        %343 = vmatpush.msra.mxu0 %v342
        %v344 = vand.u32 %v227, 4294901760
        %v345 = vsub.f32 %v227, %v344
        %346 = vmatmul.f32.gmra.mxu0 %v345
        %v347 = vpop.f32.mrf.mxu0
        %v348 = vadd.f32 %v312, %v347
        %v349 = vand.u32 %v230, 4294901760
        %v350 = vsub.f32 %v230, %v349
        %351 = vmatmul.f32.gmra.mxu0 %v350
        %v352 = vpop.f32.mrf.mxu0
        %v353 = vadd.f32 %v316, %v352
        %v354 = vand.u32 %v233, 4294901760
        %v355 = vsub.f32 %v233, %v354
        %356 = vmatmul.f32.gmra.mxu0 %v355
        %v357 = vpop.f32.mrf.mxu0
        %v358 = vadd.f32 %v320, %v357
        %v359 = vand.u32 %v236, 4294901760
        %v360 = vsub.f32 %v236, %v359
        %361 = vmatmul.f32.gmra.mxu0 %v360
        %v362 = vpop.f32.mrf.mxu0
        %v363 = vadd.f32 %v324, %v362
        %364 = vdwg.mxu0
        %365 = vmatpush.msra.mxu0 0.0
        %366 = vmatpush.msra.mxu0 0.0
        %367 = vmatpush.msra.mxu0 0.0
        %368 = vmatpush.msra.mxu0 0.0
        %369 = vmatpush.msra.mxu0 0.0
        %370 = vmatpush.msra.mxu0 0.0
        %371 = vmatpush.msra.mxu0 0.0
        %372 = vmatpush.msra.mxu0 0.0
        %373 = vmatpush.msra.mxu0 0.0
        %374 = vmatpush.msra.mxu0 0.0
        %375 = vmatpush.msra.mxu0 0.0
        %376 = vmatpush.msra.mxu0 0.0
        %377 = vmatpush.msra.mxu0 0.0
        %378 = vmatpush.msra.mxu0 0.0
        %379 = vmatpush.msra.mxu0 0.0
        %v380 = vand.u32 %v224, 4294901760
        %381 = vmatpush.msra.mxu0 %v380
        %v382 = vand.u32 %v227, 4294901760
        %v383 = vsub.f32 %v227, %v382
        %v384 = vand.u32 %v383, 4294901760
        %385 = vmatmul.f32.gmra.mxu0 %v384
        %v386 = vpop.f32.mrf.mxu0
        %v387 = vadd.f32 %v348, %v386
        %v388 = vand.u32 %v230, 4294901760
        %v389 = vsub.f32 %v230, %v388
        %v390 = vand.u32 %v389, 4294901760
        %391 = vmatmul.f32.gmra.mxu0 %v390
        %v392 = vpop.f32.mrf.mxu0
        %v393 = vadd.f32 %v353, %v392
        %v394 = vand.u32 %v233, 4294901760
        %v395 = vsub.f32 %v233, %v394
        %v396 = vand.u32 %v395, 4294901760
        %397 = vmatmul.f32.gmra.mxu0 %v396
        %v398 = vpop.f32.mrf.mxu0
        %v399 = vadd.f32 %v358, %v398
        %v400 = vand.u32 %v236, 4294901760
        %v401 = vsub.f32 %v236, %v400
        %v402 = vand.u32 %v401, 4294901760
        %403 = vmatmul.f32.gmra.mxu0 %v402
        %v404 = vpop.f32.mrf.mxu0
        %v405 = vadd.f32 %v363, %v404
        %406 = vdwg.mxu0
        %407 = vmatpush.msra.mxu0 0.0
        %408 = vmatpush.msra.mxu0 0.0
        %409 = vmatpush.msra.mxu0 0.0
        %410 = vmatpush.msra.mxu0 0.0
        %411 = vmatpush.msra.mxu0 0.0
        %412 = vmatpush.msra.mxu0 0.0
        %413 = vmatpush.msra.mxu0 0.0
        %414 = vmatpush.msra.mxu0 0.0
        %415 = vmatpush.msra.mxu0 0.0
        %416 = vmatpush.msra.mxu0 0.0
        %417 = vmatpush.msra.mxu0 0.0
        %418 = vmatpush.msra.mxu0 0.0
        %419 = vmatpush.msra.mxu0 0.0
        %420 = vmatpush.msra.mxu0 0.0
        %421 = vmatpush.msra.mxu0 0.0
        %v422 = vand.u32 %v224, 4294901760
        %v423 = vsub.f32 %v224, %v422
        %v424 = vand.u32 %v423, 4294901760
        %425 = vmatpush.msra.mxu0 %v424
        %v426 = vand.u32 %v227, 4294901760
        %427 = vmatmul.f32.gmra.mxu0 %v426
        %v428 = vpop.f32.mrf.mxu0
        %v429 = vadd.f32 %v387, %v428
        %v430 = vand.u32 %v230, 4294901760
        %431 = vmatmul.f32.gmra.mxu0 %v430
        %v432 = vpop.f32.mrf.mxu0
        %v433 = vadd.f32 %v393, %v432
        %v434 = vand.u32 %v233, 4294901760
        %435 = vmatmul.f32.gmra.mxu0 %v434
        %v436 = vpop.f32.mrf.mxu0
        %v437 = vadd.f32 %v399, %v436
        %v438 = vand.u32 %v236, 4294901760
        %439 = vmatmul.f32.gmra.mxu0 %v438
        %v440 = vpop.f32.mrf.mxu0
        %v441 = vadd.f32 %v405, %v440
        %442 = vdwg.mxu0
        %443 = vmatpush.msra.mxu0 0.0
        %444 = vmatpush.msra.mxu0 0.0
        %445 = vmatpush.msra.mxu0 0.0
        %446 = vmatpush.msra.mxu0 0.0
        %447 = vmatpush.msra.mxu0 0.0
        %448 = vmatpush.msra.mxu0 0.0
        %449 = vmatpush.msra.mxu0 0.0
        %450 = vmatpush.msra.mxu0 0.0
        %451 = vmatpush.msra.mxu0 0.0
        %452 = vmatpush.msra.mxu0 0.0
        %453 = vmatpush.msra.mxu0 0.0
        %454 = vmatpush.msra.mxu0 0.0
        %455 = vmatpush.msra.mxu0 0.0
        %456 = vmatpush.msra.mxu0 0.0
        %457 = vmatpush.msra.mxu0 0.0
        %v458 = vand.u32 %v224, 4294901760
        %459 = vmatpush.msra.mxu0 %v458
        %v460 = vand.u32 %v227, 4294901760
        %461 = vmatmul.f32.gmra.mxu0 %v460
        %v462 = vpop.f32.mrf.mxu0
        %v463 = vadd.f32 %v429, %v462
        %v464 = vand.u32 %v230, 4294901760
        %465 = vmatmul.f32.gmra.mxu0 %v464
        %v466 = vpop.f32.mrf.mxu0
        %v467 = vadd.f32 %v433, %v466
        %v468 = vand.u32 %v233, 4294901760
        %469 = vmatmul.f32.gmra.mxu0 %v468
        %v470 = vpop.f32.mrf.mxu0
        %v471 = vadd.f32 %v437, %v470
        %v472 = vand.u32 %v236, 4294901760
        %473 = vmatmul.f32.gmra.mxu0 %v472
        %v474 = vpop.f32.mrf.mxu0
        %v475 = vadd.f32 %v441, %v474
        %476 = vdwg.mxu0
        %v478 = vsel %vm225, %v185, 0
        %v481 = vsel %vm225, %v186, 0
        %v484 = vsel %vm225, %v187, 0
        %v487 = vsel %vm225, %v188, 0
        %489 = vmatpush.msra.mxu0 0.0
        %490 = vmatpush.msra.mxu0 0.0
        %491 = vmatpush.msra.mxu0 0.0
        %492 = vmatpush.msra.mxu0 0.0
        %493 = vmatpush.msra.mxu0 0.0
        %494 = vmatpush.msra.mxu0 0.0
        %495 = vmatpush.msra.mxu0 0.0
        %496 = vmatpush.msra.mxu0 0.0
        %497 = vmatpush.msra.mxu0 0.0
        %498 = vmatpush.msra.mxu0 0.0
        %499 = vmatpush.msra.mxu0 0.0
        %500 = vmatpush.msra.mxu0 0.0
        %501 = vmatpush.msra.mxu0 0.0
        %502 = vmatpush.msra.mxu0 0.0
        %503 = vmatpush.msra.mxu0 0.0
        %v504 = vand.u32 %v220, 4294901760
        %505 = vmatpush.msra.mxu0 %v504
        %v506 = vand.u32 %v478, 4294901760
        %v507 = vsub.f32 %v478, %v506
        %v508 = vand.u32 %v507, 4294901760
        %v509 = vsub.f32 %v507, %v508
        %v510 = vand.u32 %v509, 4294901760
        %511 = vmatmul.f32.gmra.mxu0 %v510
        %v512 = vpop.f32.mrf.mxu0
        %v513 = vadd.f32 %v463, %v512
        %v514 = vand.u32 %v481, 4294901760
        %v515 = vsub.f32 %v481, %v514
        %v516 = vand.u32 %v515, 4294901760
        %v517 = vsub.f32 %v515, %v516
        %v518 = vand.u32 %v517, 4294901760
        %519 = vmatmul.f32.gmra.mxu0 %v518
        %v520 = vpop.f32.mrf.mxu0
        %v521 = vadd.f32 %v467, %v520
        %v522 = vand.u32 %v484, 4294901760
        %v523 = vsub.f32 %v484, %v522
        %v524 = vand.u32 %v523, 4294901760
        %v525 = vsub.f32 %v523, %v524
        %v526 = vand.u32 %v525, 4294901760
        %527 = vmatmul.f32.gmra.mxu0 %v526
        %v528 = vpop.f32.mrf.mxu0
        %v529 = vadd.f32 %v471, %v528
        %v530 = vand.u32 %v487, 4294901760
        %v531 = vsub.f32 %v487, %v530
        %v532 = vand.u32 %v531, 4294901760
        %v533 = vsub.f32 %v531, %v532
        %v534 = vand.u32 %v533, 4294901760
        %535 = vmatmul.f32.gmra.mxu0 %v534
        %v536 = vpop.f32.mrf.mxu0
        %v537 = vadd.f32 %v475, %v536
        %538 = vdwg.mxu0
        %539 = vmatpush.msra.mxu0 0.0
        %540 = vmatpush.msra.mxu0 0.0
        %541 = vmatpush.msra.mxu0 0.0
        %542 = vmatpush.msra.mxu0 0.0
        %543 = vmatpush.msra.mxu0 0.0
        %544 = vmatpush.msra.mxu0 0.0
        %545 = vmatpush.msra.mxu0 0.0
        %546 = vmatpush.msra.mxu0 0.0
        %547 = vmatpush.msra.mxu0 0.0
        %548 = vmatpush.msra.mxu0 0.0
        %549 = vmatpush.msra.mxu0 0.0
        %550 = vmatpush.msra.mxu0 0.0
        %551 = vmatpush.msra.mxu0 0.0
        %552 = vmatpush.msra.mxu0 0.0
        %553 = vmatpush.msra.mxu0 0.0
        %v554 = vand.u32 %v220, 4294901760
        %v555 = vsub.f32 %v220, %v554
        %v556 = vand.u32 %v555, 4294901760
        %v557 = vsub.f32 %v555, %v556
        %v558 = vand.u32 %v557, 4294901760
        %559 = vmatpush.msra.mxu0 %v558
        %v560 = vand.u32 %v478, 4294901760
        %561 = vmatmul.f32.gmra.mxu0 %v560
        %v562 = vpop.f32.mrf.mxu0
        %v563 = vadd.f32 %v513, %v562
        %v564 = vand.u32 %v481, 4294901760
        %565 = vmatmul.f32.gmra.mxu0 %v564
        %v566 = vpop.f32.mrf.mxu0
        %v567 = vadd.f32 %v521, %v566
        %v568 = vand.u32 %v484, 4294901760
        %569 = vmatmul.f32.gmra.mxu0 %v568
        %v570 = vpop.f32.mrf.mxu0
        %v571 = vadd.f32 %v529, %v570
        %v572 = vand.u32 %v487, 4294901760
        %573 = vmatmul.f32.gmra.mxu0 %v572
        %v574 = vpop.f32.mrf.mxu0
        %v575 = vadd.f32 %v537, %v574
        %576 = vdwg.mxu0
        %577 = vmatpush.msra.mxu0 0.0
        %578 = vmatpush.msra.mxu0 0.0
        %579 = vmatpush.msra.mxu0 0.0
        %580 = vmatpush.msra.mxu0 0.0
        %581 = vmatpush.msra.mxu0 0.0
        %582 = vmatpush.msra.mxu0 0.0
        %583 = vmatpush.msra.mxu0 0.0
        %584 = vmatpush.msra.mxu0 0.0
        %585 = vmatpush.msra.mxu0 0.0
        %586 = vmatpush.msra.mxu0 0.0
        %587 = vmatpush.msra.mxu0 0.0
        %588 = vmatpush.msra.mxu0 0.0
        %589 = vmatpush.msra.mxu0 0.0
        %590 = vmatpush.msra.mxu0 0.0
        %591 = vmatpush.msra.mxu0 0.0
        %v592 = vand.u32 %v220, 4294901760
        %v593 = vsub.f32 %v220, %v592
        %594 = vmatpush.msra.mxu0 %v593
        %v595 = vand.u32 %v478, 4294901760
        %v596 = vsub.f32 %v478, %v595
        %597 = vmatmul.f32.gmra.mxu0 %v596
        %v598 = vpop.f32.mrf.mxu0
        %v599 = vadd.f32 %v563, %v598
        %v600 = vand.u32 %v481, 4294901760
        %v601 = vsub.f32 %v481, %v600
        %602 = vmatmul.f32.gmra.mxu0 %v601
        %v603 = vpop.f32.mrf.mxu0
        %v604 = vadd.f32 %v567, %v603
        %v605 = vand.u32 %v484, 4294901760
        %v606 = vsub.f32 %v484, %v605
        %607 = vmatmul.f32.gmra.mxu0 %v606
        %v608 = vpop.f32.mrf.mxu0
        %v609 = vadd.f32 %v571, %v608
        %v610 = vand.u32 %v487, 4294901760
        %v611 = vsub.f32 %v487, %v610
        %612 = vmatmul.f32.gmra.mxu0 %v611
        %v613 = vpop.f32.mrf.mxu0
        %v614 = vadd.f32 %v575, %v613
        %615 = vdwg.mxu0
        %616 = vmatpush.msra.mxu0 0.0
        %617 = vmatpush.msra.mxu0 0.0
        %618 = vmatpush.msra.mxu0 0.0
        %619 = vmatpush.msra.mxu0 0.0
        %620 = vmatpush.msra.mxu0 0.0
        %621 = vmatpush.msra.mxu0 0.0
        %622 = vmatpush.msra.mxu0 0.0
        %623 = vmatpush.msra.mxu0 0.0
        %624 = vmatpush.msra.mxu0 0.0
        %625 = vmatpush.msra.mxu0 0.0
        %626 = vmatpush.msra.mxu0 0.0
        %627 = vmatpush.msra.mxu0 0.0
        %628 = vmatpush.msra.mxu0 0.0
        %629 = vmatpush.msra.mxu0 0.0
        %630 = vmatpush.msra.mxu0 0.0
        %v631 = vand.u32 %v220, 4294901760
        %632 = vmatpush.msra.mxu0 %v631
        %v633 = vand.u32 %v478, 4294901760
        %v634 = vsub.f32 %v478, %v633
        %v635 = vand.u32 %v634, 4294901760
        %636 = vmatmul.f32.gmra.mxu0 %v635
        %v637 = vpop.f32.mrf.mxu0
        %v638 = vadd.f32 %v599, %v637
        %v639 = vand.u32 %v481, 4294901760
        %v640 = vsub.f32 %v481, %v639
        %v641 = vand.u32 %v640, 4294901760
        %642 = vmatmul.f32.gmra.mxu0 %v641
        %v643 = vpop.f32.mrf.mxu0
        %v644 = vadd.f32 %v604, %v643
        %v645 = vand.u32 %v484, 4294901760
        %v646 = vsub.f32 %v484, %v645
        %v647 = vand.u32 %v646, 4294901760
        %648 = vmatmul.f32.gmra.mxu0 %v647
        %v649 = vpop.f32.mrf.mxu0
        %v650 = vadd.f32 %v609, %v649
        %v651 = vand.u32 %v487, 4294901760
        %v652 = vsub.f32 %v487, %v651
        %v653 = vand.u32 %v652, 4294901760
        %654 = vmatmul.f32.gmra.mxu0 %v653
        %v655 = vpop.f32.mrf.mxu0
        %v656 = vadd.f32 %v614, %v655
        %657 = vdwg.mxu0
        %658 = vmatpush.msra.mxu0 0.0
        %659 = vmatpush.msra.mxu0 0.0
        %660 = vmatpush.msra.mxu0 0.0
        %661 = vmatpush.msra.mxu0 0.0
        %662 = vmatpush.msra.mxu0 0.0
        %663 = vmatpush.msra.mxu0 0.0
        %664 = vmatpush.msra.mxu0 0.0
        %665 = vmatpush.msra.mxu0 0.0
        %666 = vmatpush.msra.mxu0 0.0
        %667 = vmatpush.msra.mxu0 0.0
        %668 = vmatpush.msra.mxu0 0.0
        %669 = vmatpush.msra.mxu0 0.0
        %670 = vmatpush.msra.mxu0 0.0
        %671 = vmatpush.msra.mxu0 0.0
        %672 = vmatpush.msra.mxu0 0.0
        %v673 = vand.u32 %v220, 4294901760
        %v674 = vsub.f32 %v220, %v673
        %v675 = vand.u32 %v674, 4294901760
        %676 = vmatpush.msra.mxu0 %v675
        %v677 = vand.u32 %v478, 4294901760
        %678 = vmatmul.f32.gmra.mxu0 %v677
        %v679 = vpop.f32.mrf.mxu0
        %v680 = vadd.f32 %v638, %v679
        %v681 = vand.u32 %v481, 4294901760
        %682 = vmatmul.f32.gmra.mxu0 %v681
        %v683 = vpop.f32.mrf.mxu0
        %v684 = vadd.f32 %v644, %v683
        %v685 = vand.u32 %v484, 4294901760
        %686 = vmatmul.f32.gmra.mxu0 %v685
        %v687 = vpop.f32.mrf.mxu0
        %v688 = vadd.f32 %v650, %v687
        %v689 = vand.u32 %v487, 4294901760
        %690 = vmatmul.f32.gmra.mxu0 %v689
        %v691 = vpop.f32.mrf.mxu0
        %v692 = vadd.f32 %v656, %v691
        %693 = vdwg.mxu0
        %694 = vmatpush.msra.mxu0 0.0
        %695 = vmatpush.msra.mxu0 0.0
        %696 = vmatpush.msra.mxu0 0.0
        %697 = vmatpush.msra.mxu0 0.0
        %698 = vmatpush.msra.mxu0 0.0
        %699 = vmatpush.msra.mxu0 0.0
        %700 = vmatpush.msra.mxu0 0.0
        %701 = vmatpush.msra.mxu0 0.0
        %702 = vmatpush.msra.mxu0 0.0
        %703 = vmatpush.msra.mxu0 0.0
        %704 = vmatpush.msra.mxu0 0.0
        %705 = vmatpush.msra.mxu0 0.0
        %706 = vmatpush.msra.mxu0 0.0
        %707 = vmatpush.msra.mxu0 0.0
        %708 = vmatpush.msra.mxu0 0.0
        %v709 = vand.u32 %v220, 4294901760
        %710 = vmatpush.msra.mxu0 %v709
        %v711 = vand.u32 %v478, 4294901760
        %712 = vmatmul.f32.gmra.mxu0 %v711
        %v713 = vpop.f32.mrf.mxu0
        %v714 = vadd.f32 %v680, %v713
        %v715 = vand.u32 %v481, 4294901760
        %716 = vmatmul.f32.gmra.mxu0 %v715
        %v717 = vpop.f32.mrf.mxu0
        %v718 = vadd.f32 %v684, %v717
        %v719 = vand.u32 %v484, 4294901760
        %720 = vmatmul.f32.gmra.mxu0 %v719
        %v721 = vpop.f32.mrf.mxu0
        %v722 = vadd.f32 %v688, %v721
        %v723 = vand.u32 %v487, 4294901760
        %724 = vmatmul.f32.gmra.mxu0 %v723
        %v725 = vpop.f32.mrf.mxu0
        %v726 = vadd.f32 %v692, %v725
        %727 = vdwg.mxu0
        %v729 = vsel %vm225, %v209, 0
        %v732 = vsel %vm225, %v210, 0
        %v735 = vsel %vm225, %v211, 0
        %v738 = vsel %vm225, %v212, 0
        %740 = vmatpush.msra.mxu0 0.0
        %741 = vmatpush.msra.mxu0 0.0
        %742 = vmatpush.msra.mxu0 0.0
        %743 = vmatpush.msra.mxu0 0.0
        %744 = vmatpush.msra.mxu0 0.0
        %745 = vmatpush.msra.mxu0 0.0
        %746 = vmatpush.msra.mxu0 0.0
        %747 = vmatpush.msra.mxu0 0.0
        %748 = vmatpush.msra.mxu0 0.0
        %749 = vmatpush.msra.mxu0 0.0
        %750 = vmatpush.msra.mxu0 0.0
        %751 = vmatpush.msra.mxu0 0.0
        %752 = vmatpush.msra.mxu0 0.0
        %753 = vmatpush.msra.mxu0 0.0
        %754 = vmatpush.msra.mxu0 0.0
        %v755 = vand.u32 %v224, 4294901760
        %756 = vmatpush.msra.mxu0 %v755
        %v757 = vand.u32 %v729, 4294901760
        %v758 = vsub.f32 %v729, %v757
        %v759 = vand.u32 %v758, 4294901760
        %v760 = vsub.f32 %v758, %v759
        %v761 = vand.u32 %v760, 4294901760
        %762 = vmatmul.f32.gmra.mxu0 %v761
        %v763 = vpop.f32.mrf.mxu0
        %v764 = vadd.f32 0.0, %v763
        %v765 = vand.u32 %v732, 4294901760
        %v766 = vsub.f32 %v732, %v765
        %v767 = vand.u32 %v766, 4294901760
        %v768 = vsub.f32 %v766, %v767
        %v769 = vand.u32 %v768, 4294901760
        %770 = vmatmul.f32.gmra.mxu0 %v769
        %v771 = vpop.f32.mrf.mxu0
        %v772 = vadd.f32 0.0, %v771
        %v773 = vand.u32 %v735, 4294901760
        %v774 = vsub.f32 %v735, %v773
        %v775 = vand.u32 %v774, 4294901760
        %v776 = vsub.f32 %v774, %v775
        %v777 = vand.u32 %v776, 4294901760
        %778 = vmatmul.f32.gmra.mxu0 %v777
        %v779 = vpop.f32.mrf.mxu0
        %v780 = vadd.f32 0.0, %v779
        %v781 = vand.u32 %v738, 4294901760
        %v782 = vsub.f32 %v738, %v781
        %v783 = vand.u32 %v782, 4294901760
        %v784 = vsub.f32 %v782, %v783
        %v785 = vand.u32 %v784, 4294901760
        %786 = vmatmul.f32.gmra.mxu0 %v785
        %v787 = vpop.f32.mrf.mxu0
        %v788 = vadd.f32 0.0, %v787
        %789 = vdwg.mxu0
        %790 = vmatpush.msra.mxu0 0.0
        %791 = vmatpush.msra.mxu0 0.0
        %792 = vmatpush.msra.mxu0 0.0
        %793 = vmatpush.msra.mxu0 0.0
        %794 = vmatpush.msra.mxu0 0.0
        %795 = vmatpush.msra.mxu0 0.0
        %796 = vmatpush.msra.mxu0 0.0
        %797 = vmatpush.msra.mxu0 0.0
        %798 = vmatpush.msra.mxu0 0.0
        %799 = vmatpush.msra.mxu0 0.0
        %800 = vmatpush.msra.mxu0 0.0
        %801 = vmatpush.msra.mxu0 0.0
        %802 = vmatpush.msra.mxu0 0.0
        %803 = vmatpush.msra.mxu0 0.0
        %804 = vmatpush.msra.mxu0 0.0
        %v805 = vand.u32 %v224, 4294901760
        %v806 = vsub.f32 %v224, %v805
        %v807 = vand.u32 %v806, 4294901760
        %v808 = vsub.f32 %v806, %v807
        %v809 = vand.u32 %v808, 4294901760
        %810 = vmatpush.msra.mxu0 %v809
        %v811 = vand.u32 %v729, 4294901760
        %812 = vmatmul.f32.gmra.mxu0 %v811
        %v813 = vpop.f32.mrf.mxu0
        %v814 = vadd.f32 %v764, %v813
        %v815 = vand.u32 %v732, 4294901760
        %816 = vmatmul.f32.gmra.mxu0 %v815
        %v817 = vpop.f32.mrf.mxu0
        %v818 = vadd.f32 %v772, %v817
        %v819 = vand.u32 %v735, 4294901760
        %820 = vmatmul.f32.gmra.mxu0 %v819
        %v821 = vpop.f32.mrf.mxu0
        %v822 = vadd.f32 %v780, %v821
        %v823 = vand.u32 %v738, 4294901760
        %824 = vmatmul.f32.gmra.mxu0 %v823
        %v825 = vpop.f32.mrf.mxu0
        %v826 = vadd.f32 %v788, %v825
        %827 = vdwg.mxu0
        %828 = vmatpush.msra.mxu0 0.0
        %829 = vmatpush.msra.mxu0 0.0
        %830 = vmatpush.msra.mxu0 0.0
        %831 = vmatpush.msra.mxu0 0.0
        %832 = vmatpush.msra.mxu0 0.0
        %833 = vmatpush.msra.mxu0 0.0
        %834 = vmatpush.msra.mxu0 0.0
        %835 = vmatpush.msra.mxu0 0.0
        %836 = vmatpush.msra.mxu0 0.0
        %837 = vmatpush.msra.mxu0 0.0
        %838 = vmatpush.msra.mxu0 0.0
        %839 = vmatpush.msra.mxu0 0.0
        %840 = vmatpush.msra.mxu0 0.0
        %841 = vmatpush.msra.mxu0 0.0
        %842 = vmatpush.msra.mxu0 0.0
        %v843 = vand.u32 %v224, 4294901760
        %v844 = vsub.f32 %v224, %v843
        %845 = vmatpush.msra.mxu0 %v844
        %v846 = vand.u32 %v729, 4294901760
        %v847 = vsub.f32 %v729, %v846
        %848 = vmatmul.f32.gmra.mxu0 %v847
        %v849 = vpop.f32.mrf.mxu0
        %v850 = vadd.f32 %v814, %v849
        %v851 = vand.u32 %v732, 4294901760
        %v852 = vsub.f32 %v732, %v851
        %853 = vmatmul.f32.gmra.mxu0 %v852
        %v854 = vpop.f32.mrf.mxu0
        %v855 = vadd.f32 %v818, %v854
        %v856 = vand.u32 %v735, 4294901760
        %v857 = vsub.f32 %v735, %v856
        %858 = vmatmul.f32.gmra.mxu0 %v857
        %v859 = vpop.f32.mrf.mxu0
        %v860 = vadd.f32 %v822, %v859
        %v861 = vand.u32 %v738, 4294901760
        %v862 = vsub.f32 %v738, %v861
        %863 = vmatmul.f32.gmra.mxu0 %v862
        %v864 = vpop.f32.mrf.mxu0
        %v865 = vadd.f32 %v826, %v864
        %866 = vdwg.mxu0
        %867 = vmatpush.msra.mxu0 0.0
        %868 = vmatpush.msra.mxu0 0.0
        %869 = vmatpush.msra.mxu0 0.0
        %870 = vmatpush.msra.mxu0 0.0
        %871 = vmatpush.msra.mxu0 0.0
        %872 = vmatpush.msra.mxu0 0.0
        %873 = vmatpush.msra.mxu0 0.0
        %874 = vmatpush.msra.mxu0 0.0
        %875 = vmatpush.msra.mxu0 0.0
        %876 = vmatpush.msra.mxu0 0.0
        %877 = vmatpush.msra.mxu0 0.0
        %878 = vmatpush.msra.mxu0 0.0
        %879 = vmatpush.msra.mxu0 0.0
        %880 = vmatpush.msra.mxu0 0.0
        %881 = vmatpush.msra.mxu0 0.0
        %v882 = vand.u32 %v224, 4294901760
        %883 = vmatpush.msra.mxu0 %v882
        %v884 = vand.u32 %v729, 4294901760
        %v885 = vsub.f32 %v729, %v884
        %v886 = vand.u32 %v885, 4294901760
        %887 = vmatmul.f32.gmra.mxu0 %v886
        %v888 = vpop.f32.mrf.mxu0
        %v889 = vadd.f32 %v850, %v888
        %v890 = vand.u32 %v732, 4294901760
        %v891 = vsub.f32 %v732, %v890
        %v892 = vand.u32 %v891, 4294901760
        %893 = vmatmul.f32.gmra.mxu0 %v892
        %v894 = vpop.f32.mrf.mxu0
        %v895 = vadd.f32 %v855, %v894
        %v896 = vand.u32 %v735, 4294901760
        %v897 = vsub.f32 %v735, %v896
        %v898 = vand.u32 %v897, 4294901760
        %899 = vmatmul.f32.gmra.mxu0 %v898
        %v900 = vpop.f32.mrf.mxu0
        %v901 = vadd.f32 %v860, %v900
        %v902 = vand.u32 %v738, 4294901760
        %v903 = vsub.f32 %v738, %v902
        %v904 = vand.u32 %v903, 4294901760
        %905 = vmatmul.f32.gmra.mxu0 %v904
        %v906 = vpop.f32.mrf.mxu0
        %v907 = vadd.f32 %v865, %v906
        %908 = vdwg.mxu0
        %909 = vmatpush.msra.mxu0 0.0
        %910 = vmatpush.msra.mxu0 0.0
        %911 = vmatpush.msra.mxu0 0.0
        %912 = vmatpush.msra.mxu0 0.0
        %913 = vmatpush.msra.mxu0 0.0
        %914 = vmatpush.msra.mxu0 0.0
        %915 = vmatpush.msra.mxu0 0.0
        %916 = vmatpush.msra.mxu0 0.0
        %917 = vmatpush.msra.mxu0 0.0
        %918 = vmatpush.msra.mxu0 0.0
        %919 = vmatpush.msra.mxu0 0.0
        %920 = vmatpush.msra.mxu0 0.0
        %921 = vmatpush.msra.mxu0 0.0
        %922 = vmatpush.msra.mxu0 0.0
        %923 = vmatpush.msra.mxu0 0.0
        %v924 = vand.u32 %v224, 4294901760
        %v925 = vsub.f32 %v224, %v924
        %v926 = vand.u32 %v925, 4294901760
        %927 = vmatpush.msra.mxu0 %v926
        %v928 = vand.u32 %v729, 4294901760
        %929 = vmatmul.f32.gmra.mxu0 %v928
        %v930 = vpop.f32.mrf.mxu0
        %v931 = vadd.f32 %v889, %v930
        %v932 = vand.u32 %v732, 4294901760
        %933 = vmatmul.f32.gmra.mxu0 %v932
        %v934 = vpop.f32.mrf.mxu0
        %v935 = vadd.f32 %v895, %v934
        %v936 = vand.u32 %v735, 4294901760
        %937 = vmatmul.f32.gmra.mxu0 %v936
        %v938 = vpop.f32.mrf.mxu0
        %v939 = vadd.f32 %v901, %v938
        %v940 = vand.u32 %v738, 4294901760
        %941 = vmatmul.f32.gmra.mxu0 %v940
        %v942 = vpop.f32.mrf.mxu0
        %v943 = vadd.f32 %v907, %v942
        %944 = vdwg.mxu0
        %945 = vmatpush.msra.mxu0 0.0
        %946 = vmatpush.msra.mxu0 0.0
        %947 = vmatpush.msra.mxu0 0.0
        %948 = vmatpush.msra.mxu0 0.0
        %949 = vmatpush.msra.mxu0 0.0
        %950 = vmatpush.msra.mxu0 0.0
        %951 = vmatpush.msra.mxu0 0.0
        %952 = vmatpush.msra.mxu0 0.0
        %953 = vmatpush.msra.mxu0 0.0
        %954 = vmatpush.msra.mxu0 0.0
        %955 = vmatpush.msra.mxu0 0.0
        %956 = vmatpush.msra.mxu0 0.0
        %957 = vmatpush.msra.mxu0 0.0
        %958 = vmatpush.msra.mxu0 0.0
        %959 = vmatpush.msra.mxu0 0.0
        %v960 = vand.u32 %v224, 4294901760
        %961 = vmatpush.msra.mxu0 %v960
        %v962 = vand.u32 %v729, 4294901760
        %963 = vmatmul.f32.gmra.mxu0 %v962
        %v964 = vpop.f32.mrf.mxu0
        %v965 = vadd.f32 %v931, %v964
        %v966 = vand.u32 %v732, 4294901760
        %967 = vmatmul.f32.gmra.mxu0 %v966
        %v968 = vpop.f32.mrf.mxu0
        %v969 = vadd.f32 %v935, %v968
        %v970 = vand.u32 %v735, 4294901760
        %971 = vmatmul.f32.gmra.mxu0 %v970
        %v972 = vpop.f32.mrf.mxu0
        %v973 = vadd.f32 %v939, %v972
        %v974 = vand.u32 %v738, 4294901760
        %975 = vmatmul.f32.gmra.mxu0 %v974
        %v976 = vpop.f32.mrf.mxu0
        %v977 = vadd.f32 %v943, %v976
        %978 = vdwg.mxu0
        %v980 = vsel %vm225, %v193, 0
        %v983 = vsel %vm225, %v194, 0
        %v986 = vsel %vm225, %v195, 0
        %v989 = vsel %vm225, %v196, 0
        %991 = vmatpush.msra.mxu0 0.0
        %992 = vmatpush.msra.mxu0 0.0
        %993 = vmatpush.msra.mxu0 0.0
        %994 = vmatpush.msra.mxu0 0.0
        %995 = vmatpush.msra.mxu0 0.0
        %996 = vmatpush.msra.mxu0 0.0
        %997 = vmatpush.msra.mxu0 0.0
        %998 = vmatpush.msra.mxu0 0.0
        %999 = vmatpush.msra.mxu0 0.0
        %1000 = vmatpush.msra.mxu0 0.0
        %1001 = vmatpush.msra.mxu0 0.0
        %1002 = vmatpush.msra.mxu0 0.0
        %1003 = vmatpush.msra.mxu0 0.0
        %1004 = vmatpush.msra.mxu0 0.0
        %1005 = vmatpush.msra.mxu0 0.0
        %v1006 = vand.u32 %v220, 4294901760
        %1007 = vmatpush.msra.mxu0 %v1006
        %v1008 = vand.u32 %v980, 4294901760
        %v1009 = vsub.f32 %v980, %v1008
        %v1010 = vand.u32 %v1009, 4294901760
        %v1011 = vsub.f32 %v1009, %v1010
        %v1012 = vand.u32 %v1011, 4294901760
        %1013 = vmatmul.f32.gmra.mxu0 %v1012
        %v1014 = vpop.f32.mrf.mxu0
        %v1015 = vadd.f32 %v965, %v1014
        %v1016 = vand.u32 %v983, 4294901760
        %v1017 = vsub.f32 %v983, %v1016
        %v1018 = vand.u32 %v1017, 4294901760
        %v1019 = vsub.f32 %v1017, %v1018
        %v1020 = vand.u32 %v1019, 4294901760
        %1021 = vmatmul.f32.gmra.mxu0 %v1020
        %v1022 = vpop.f32.mrf.mxu0
        %v1023 = vadd.f32 %v969, %v1022
        %v1024 = vand.u32 %v986, 4294901760
        %v1025 = vsub.f32 %v986, %v1024
        %v1026 = vand.u32 %v1025, 4294901760
        %v1027 = vsub.f32 %v1025, %v1026
        %v1028 = vand.u32 %v1027, 4294901760
        %1029 = vmatmul.f32.gmra.mxu0 %v1028
        %v1030 = vpop.f32.mrf.mxu0
        %v1031 = vadd.f32 %v973, %v1030
        %v1032 = vand.u32 %v989, 4294901760
        %v1033 = vsub.f32 %v989, %v1032
        %v1034 = vand.u32 %v1033, 4294901760
        %v1035 = vsub.f32 %v1033, %v1034
        %v1036 = vand.u32 %v1035, 4294901760
        %1037 = vmatmul.f32.gmra.mxu0 %v1036
        %v1038 = vpop.f32.mrf.mxu0
        %v1039 = vadd.f32 %v977, %v1038
        %1040 = vdwg.mxu0
        %1041 = vmatpush.msra.mxu0 0.0
        %1042 = vmatpush.msra.mxu0 0.0
        %1043 = vmatpush.msra.mxu0 0.0
        %1044 = vmatpush.msra.mxu0 0.0
        %1045 = vmatpush.msra.mxu0 0.0
        %1046 = vmatpush.msra.mxu0 0.0
        %1047 = vmatpush.msra.mxu0 0.0
        %1048 = vmatpush.msra.mxu0 0.0
        %1049 = vmatpush.msra.mxu0 0.0
        %1050 = vmatpush.msra.mxu0 0.0
        %1051 = vmatpush.msra.mxu0 0.0
        %1052 = vmatpush.msra.mxu0 0.0
        %1053 = vmatpush.msra.mxu0 0.0
        %1054 = vmatpush.msra.mxu0 0.0
        %1055 = vmatpush.msra.mxu0 0.0
        %v1056 = vand.u32 %v220, 4294901760
        %v1057 = vsub.f32 %v220, %v1056
        %v1058 = vand.u32 %v1057, 4294901760
        %v1059 = vsub.f32 %v1057, %v1058
        %v1060 = vand.u32 %v1059, 4294901760
        %1061 = vmatpush.msra.mxu0 %v1060
        %v1062 = vand.u32 %v980, 4294901760
        %1063 = vmatmul.f32.gmra.mxu0 %v1062
        %v1064 = vpop.f32.mrf.mxu0
        %v1065 = vadd.f32 %v1015, %v1064
        %v1066 = vand.u32 %v983, 4294901760
        %1067 = vmatmul.f32.gmra.mxu0 %v1066
        %v1068 = vpop.f32.mrf.mxu0
        %v1069 = vadd.f32 %v1023, %v1068
        %v1070 = vand.u32 %v986, 4294901760
        %1071 = vmatmul.f32.gmra.mxu0 %v1070
        %v1072 = vpop.f32.mrf.mxu0
        %v1073 = vadd.f32 %v1031, %v1072
        %v1074 = vand.u32 %v989, 4294901760
        %1075 = vmatmul.f32.gmra.mxu0 %v1074
        %v1076 = vpop.f32.mrf.mxu0
        %v1077 = vadd.f32 %v1039, %v1076
        %1078 = vdwg.mxu0
        %1079 = vmatpush.msra.mxu0 0.0
        %1080 = vmatpush.msra.mxu0 0.0
        %1081 = vmatpush.msra.mxu0 0.0
        %1082 = vmatpush.msra.mxu0 0.0
        %1083 = vmatpush.msra.mxu0 0.0
        %1084 = vmatpush.msra.mxu0 0.0
        %1085 = vmatpush.msra.mxu0 0.0
        %1086 = vmatpush.msra.mxu0 0.0
        %1087 = vmatpush.msra.mxu0 0.0
        %1088 = vmatpush.msra.mxu0 0.0
        %1089 = vmatpush.msra.mxu0 0.0
        %1090 = vmatpush.msra.mxu0 0.0
        %1091 = vmatpush.msra.mxu0 0.0
        %1092 = vmatpush.msra.mxu0 0.0
        %1093 = vmatpush.msra.mxu0 0.0
        %v1094 = vand.u32 %v220, 4294901760
        %v1095 = vsub.f32 %v220, %v1094
        %1096 = vmatpush.msra.mxu0 %v1095
        %v1097 = vand.u32 %v980, 4294901760
        %v1098 = vsub.f32 %v980, %v1097
        %1099 = vmatmul.f32.gmra.mxu0 %v1098
        %v1100 = vpop.f32.mrf.mxu0
        %v1101 = vadd.f32 %v1065, %v1100
        %v1102 = vand.u32 %v983, 4294901760
        %v1103 = vsub.f32 %v983, %v1102
        %1104 = vmatmul.f32.gmra.mxu0 %v1103
        %v1105 = vpop.f32.mrf.mxu0
        %v1106 = vadd.f32 %v1069, %v1105
        %v1107 = vand.u32 %v986, 4294901760
        %v1108 = vsub.f32 %v986, %v1107
        %1109 = vmatmul.f32.gmra.mxu0 %v1108
        %v1110 = vpop.f32.mrf.mxu0
        %v1111 = vadd.f32 %v1073, %v1110
        %v1112 = vand.u32 %v989, 4294901760
        %v1113 = vsub.f32 %v989, %v1112
        %1114 = vmatmul.f32.gmra.mxu0 %v1113
        %v1115 = vpop.f32.mrf.mxu0
        %v1116 = vadd.f32 %v1077, %v1115
        %1117 = vdwg.mxu0
        %1118 = vmatpush.msra.mxu0 0.0
        %1119 = vmatpush.msra.mxu0 0.0
        %1120 = vmatpush.msra.mxu0 0.0
        %1121 = vmatpush.msra.mxu0 0.0
        %1122 = vmatpush.msra.mxu0 0.0
        %1123 = vmatpush.msra.mxu0 0.0
        %1124 = vmatpush.msra.mxu0 0.0
        %1125 = vmatpush.msra.mxu0 0.0
        %1126 = vmatpush.msra.mxu0 0.0
        %1127 = vmatpush.msra.mxu0 0.0
        %1128 = vmatpush.msra.mxu0 0.0
        %1129 = vmatpush.msra.mxu0 0.0
        %1130 = vmatpush.msra.mxu0 0.0
        %1131 = vmatpush.msra.mxu0 0.0
        %1132 = vmatpush.msra.mxu0 0.0
        %v1133 = vand.u32 %v220, 4294901760
        %1134 = vmatpush.msra.mxu0 %v1133
        %v1135 = vand.u32 %v980, 4294901760
        %v1136 = vsub.f32 %v980, %v1135
        %v1137 = vand.u32 %v1136, 4294901760
        %1138 = vmatmul.f32.gmra.mxu0 %v1137
        %v1139 = vpop.f32.mrf.mxu0
        %v1140 = vadd.f32 %v1101, %v1139
        %v1141 = vand.u32 %v983, 4294901760
        %v1142 = vsub.f32 %v983, %v1141
        %v1143 = vand.u32 %v1142, 4294901760
        %1144 = vmatmul.f32.gmra.mxu0 %v1143
        %v1145 = vpop.f32.mrf.mxu0
        %v1146 = vadd.f32 %v1106, %v1145
        %v1147 = vand.u32 %v986, 4294901760
        %v1148 = vsub.f32 %v986, %v1147
        %v1149 = vand.u32 %v1148, 4294901760
        %1150 = vmatmul.f32.gmra.mxu0 %v1149
        %v1151 = vpop.f32.mrf.mxu0
        %v1152 = vadd.f32 %v1111, %v1151
        %v1153 = vand.u32 %v989, 4294901760
        %v1154 = vsub.f32 %v989, %v1153
        %v1155 = vand.u32 %v1154, 4294901760
        %1156 = vmatmul.f32.gmra.mxu0 %v1155
        %v1157 = vpop.f32.mrf.mxu0
        %v1158 = vadd.f32 %v1116, %v1157
        %1159 = vdwg.mxu0
        %1160 = vmatpush.msra.mxu0 0.0
        %1161 = vmatpush.msra.mxu0 0.0
        %1162 = vmatpush.msra.mxu0 0.0
        %1163 = vmatpush.msra.mxu0 0.0
        %1164 = vmatpush.msra.mxu0 0.0
        %1165 = vmatpush.msra.mxu0 0.0
        %1166 = vmatpush.msra.mxu0 0.0
        %1167 = vmatpush.msra.mxu0 0.0
        %1168 = vmatpush.msra.mxu0 0.0
        %1169 = vmatpush.msra.mxu0 0.0
        %1170 = vmatpush.msra.mxu0 0.0
        %1171 = vmatpush.msra.mxu0 0.0
        %1172 = vmatpush.msra.mxu0 0.0
        %1173 = vmatpush.msra.mxu0 0.0
        %1174 = vmatpush.msra.mxu0 0.0
        %v1175 = vand.u32 %v220, 4294901760
        %v1176 = vsub.f32 %v220, %v1175
        %v1177 = vand.u32 %v1176, 4294901760
        %1178 = vmatpush.msra.mxu0 %v1177
        %v1179 = vand.u32 %v980, 4294901760
        %1180 = vmatmul.f32.gmra.mxu0 %v1179
        %v1181 = vpop.f32.mrf.mxu0
        %v1182 = vadd.f32 %v1140, %v1181
        %v1183 = vand.u32 %v983, 4294901760
        %1184 = vmatmul.f32.gmra.mxu0 %v1183
        %v1185 = vpop.f32.mrf.mxu0
        %v1186 = vadd.f32 %v1146, %v1185
        %v1187 = vand.u32 %v986, 4294901760
        %1188 = vmatmul.f32.gmra.mxu0 %v1187
        %v1189 = vpop.f32.mrf.mxu0
        %v1190 = vadd.f32 %v1152, %v1189
        %v1191 = vand.u32 %v989, 4294901760
        %1192 = vmatmul.f32.gmra.mxu0 %v1191
        %v1193 = vpop.f32.mrf.mxu0
        %v1194 = vadd.f32 %v1158, %v1193
        %1195 = vdwg.mxu0
        %1196 = vmatpush.msra.mxu0 0.0
        %1197 = vmatpush.msra.mxu0 0.0
        %1198 = vmatpush.msra.mxu0 0.0
        %1199 = vmatpush.msra.mxu0 0.0
        %1200 = vmatpush.msra.mxu0 0.0
        %1201 = vmatpush.msra.mxu0 0.0
        %1202 = vmatpush.msra.mxu0 0.0
        %1203 = vmatpush.msra.mxu0 0.0
        %1204 = vmatpush.msra.mxu0 0.0
        %1205 = vmatpush.msra.mxu0 0.0
        %1206 = vmatpush.msra.mxu0 0.0
        %1207 = vmatpush.msra.mxu0 0.0
        %1208 = vmatpush.msra.mxu0 0.0
        %1209 = vmatpush.msra.mxu0 0.0
        %1210 = vmatpush.msra.mxu0 0.0
        %v1211 = vand.u32 %v220, 4294901760
        %1212 = vmatpush.msra.mxu0 %v1211
        %v1213 = vand.u32 %v980, 4294901760
        %1214 = vmatmul.f32.gmra.mxu0 %v1213
        %v1215 = vpop.f32.mrf.mxu0
        %v1216 = vadd.f32 %v1182, %v1215
        %v1217 = vand.u32 %v983, 4294901760
        %1218 = vmatmul.f32.gmra.mxu0 %v1217
        %v1219 = vpop.f32.mrf.mxu0
        %v1220 = vadd.f32 %v1186, %v1219
        %v1221 = vand.u32 %v986, 4294901760
        %1222 = vmatmul.f32.gmra.mxu0 %v1221
        %v1223 = vpop.f32.mrf.mxu0
        %v1224 = vadd.f32 %v1190, %v1223
        %v1225 = vand.u32 %v989, 4294901760
        %1226 = vmatmul.f32.gmra.mxu0 %v1225
        %v1227 = vpop.f32.mrf.mxu0
        %v1228 = vadd.f32 %v1194, %v1227
        %1229 = vdwg.mxu0
        %vm1230 = vcmask 130048
        %1231 = vst.msk [vmem:[%s134] sm:$0xff] %vm1230, %v714
        %1232 = vst.msk [vmem:[%s134 + $0x8] sm:$0xff] %vm1230, %v718
        %1233 = vst.msk [vmem:[%s134 + $0x10] sm:$0xff] %vm1230, %v722
        %1234 = vst.msk [vmem:[%s134 + $0x18] sm:$0xff] %vm1230, %v726
        %1239 = vrot.lane.b32.xlu0 %v1216, 16
        %v1240 = vpop.permute.xlu0 %1239
        %1241 = vrot.lane.b32.xlu0 %v1220, 16
        %v1242 = vpop.permute.xlu0 %1241
        %1243 = vrot.lane.b32.xlu0 %v1224, 16
        %v1244 = vpop.permute.xlu0 %1243
        %1245 = vrot.lane.b32.xlu0 %v1228, 16
        %v1246 = vpop.permute.xlu0 %1245
        %vm1251 = vcmask 261248
        %1252 = vst.msk [vmem:[%s134] sm:$0xff] %vm1251, %v1240
        %1253 = vst.msk [vmem:[%s134 + $0x8] sm:$0xff] %vm1251, %v1242
        %1254 = vst.msk [vmem:[%s134 + $0x10] sm:$0xff] %vm1251, %v1244
        %1255 = vst.msk [vmem:[%s134 + $0x18] sm:$0xff] %vm1251, %v1246
        %s1256 = sand.u32 %s65, 1
        %s1257 = scalar_lea.sflag [#allocation3], %s1256
        %s1258 = sand.u32 %s65, 1
        %s1259 = smul.addr %s1258, 32
        %s1260 = scalar_lea.vmem [#allocation2], %s1259
        // Predicated region
        $region25: #{tpu_custom_call.1} parent=23 // pred_check
          %p1261 = pneg %p75
        $region26: #{tpu_custom_call.1} parent=23 // pred_check_branch
          %1263 = sbr.rel (%p1261) target = $region28
        $region27: #{tpu_custom_call.1} parent=23 // pred_region
          %s1264 = smul.u32 4, %s20
          %1266 = vsyncadd %s1257, 0
          %s1267 = smul.addr %s19, 4
          %s1268 = sadd.s32 %s1264, %s1267
          %s1269 = smul.addr %s1268, 8
          %s1270 = scalar_lea.hbm %s1, %s1269
          %s1271 = sshll.u32 %s1260, 4
          %s1272 = int_to_ptr.vmem [resolvable:$true] %s1271
          %s1273 = sshll.u32 %s1270, 4
          %s1274 = int_to_ptr.hbm [resolvable:$true] %s1273
          %1279 = dma.vmem_to_hbm [thread:$0]  %s1272, 512, %s1274, %s1257, 128, 128, 8
        $region28: #{tpu_custom_call.1} parent=23 // pred_fallthru
          _
      $region24: #{tpu_custom_call.1} parent=5 // pred_fallthru
        _
      %p1280 = scmp.le.s32.totalorder 2, %s10
      // Predicated region
      $region29: #{tpu_custom_call.1} parent=5 // pred_check
        %p1281 = pneg %p1280
      $region30: #{tpu_custom_call.1} parent=5 // pred_check_branch
        %1283 = sbr.rel (%p1281) target = $region32
      $region31: #{tpu_custom_call.1} parent=5 // pred_region
        %s1284 = ssub.s32 %s10, 2
        // Predicated region
        $region33: #{tpu_custom_call.1} parent=31 // pred_check
          %p1285 = pneg %p81
        $region34: #{tpu_custom_call.1} parent=31 // pred_check_branch
          %1287 = sbr.rel (%p1285) target = $region36
        $region35: #{tpu_custom_call.1} parent=31 // pred_region
          %s1288 = sand.u32 %s66, 1
          %s1289 = scalar_lea.sflag [#allocation3], %s1288
          %s1290 = sand.u32 %s66, 1
          %s1291 = smul.addr %s1290, 32
          %s1292 = scalar_lea.vmem [#allocation2], %s1291
          %1294 = dma.done %s1289, 512
        $region36: #{tpu_custom_call.1} parent=31 // pred_fallthru
          _
      $region32: #{tpu_custom_call.1} parent=5 // pred_fallthru
        _
    $region6: #{tpu_custom_call.1} parent=1 // loop_footer
      %s14 = sadd.s32 1, %s10
    $region7: #{tpu_custom_call.1} parent=1 // loop_footer_branch
      %9 = sbr.rel target = $region3
    $region8: #{tpu_custom_call.1} parent=1 // loop_exit
      _
    %1295 = vsyncpa [#allocation3], 1
    %s1296 = scalar_lea.sflag [#allocation3], 1
    %1297 = vsyncpa %s1296, 1

</llo_original>
